<compile_context>
chip_gen: v5e
topology: v5e:2x2
jax: 0.10.0
libtpu: 0.0.40
codegen_flags: <defaults>
</compile_context>

<pallas_src>
import functools
import math

import jax
import jax.numpy as jnp
from jax.experimental import pallas as pl
from jax.experimental.pallas import tpu as pltpu


_VMEM_BUDGET = 16 * 1024 * 1024   # per-step live bytes incl. double buffering;
                                  # safe under v5e 16MiB / v7x 32MiB scoped defaults
_VMEM_LIMIT = 32 * 1024 * 1024


def _unpool_kernel(h_ref, idx_ref, out_ref, *, node_count, W, hl, L):
    # h_ref/idx_ref: (bm, tHc, hl*W)  pooled values / flat plane indices (lane-folded)
    # out_ref:       (bm, tHc, L)     unpooled plane, L = hl*node_count*W, stored once
    h = h_ref[...]
    idx = idx_ref[...]
    bm, tHc, _ = h.shape
    hc_off = pl.program_id(1) * tHc

    # Flat (H*node_count, W)-plane index of output slot (hc, j=0, k=0, w) is hc*L + w.
    hc = jax.lax.broadcasted_iota(jnp.int32, (bm, tHc, W), 1) + hc_off
    w = jax.lax.broadcasted_iota(jnp.int32, (bm, tHc, W), 2)
    base = hc * L + w

    zero = jnp.zeros((), h.dtype)
    pieces = []
    # Static unroll over (j, k): j = row-within-fold, k = pool-window offset.
    # Each piece is a VPU compare+select on W lanes; lane placement happens once,
    # in registers (concatenate), and the block is written exactly once.
    for j in range(hl):
        hj = h[:, :, j * W:(j + 1) * W]
        ij = idx[:, :, j * W:(j + 1) * W]
        for k in range(node_count):
            off = (j * node_count + k) * W
            pieces.append(jnp.where(ij == base + off, hj, zero))
    vals = pieces[0] if len(pieces) == 1 else jnp.concatenate(pieces, axis=-1)
    out_ref[...] = vals.astype(out_ref.dtype)


def _pick_lane_fold(H, node_count, W):
    """Smallest hl with H % hl == 0 and (hl*node_count*W) % 128 == 0, else 1."""
    ncw = node_count * W
    if ncw % 128 == 0:
        return 1
    need = 128 // math.gcd(ncw, 128)   # hl must be a multiple of this
    hl = need
    while hl <= H:
        if H % hl == 0:
            return hl
        hl += need
    return 1    # cannot reach a 128-multiple; fall back to unfolded (masked stores)


def _pick_tiles(B, Hc, in_lane, L, val_bytes, sub):
    """Largest (bm, tHc) block under the VMEM budget with >=4 grid steps if possible."""
    def live(bm, th):
        # double-buffered input (values + int32 indices) and output blocks
        return 2 * bm * th * (in_lane * (val_bytes + 4) + L * val_bytes)

    th_cands = sorted({t for t in range(sub, Hc + 1, sub) if Hc % t == 0} | {Hc})
    bm_cands = [d for d in range(1, B + 1) if B % d == 0]
    best_key, best = None, (1, th_cands[0])
    for th in th_cands:
        for bm in bm_cands:
            lb = live(bm, th)
            if lb > _VMEM_BUDGET:
                continue
            steps = (B // bm) * (Hc // th)
            # First get enough steps to pipeline the writeback DMA and feed both
            # v7x TensorCores, then take the biggest block that fits (amortizes
            # the ~0.35us/step overhead).
            key = (min(steps, 4), lb)
            if best_key is None or key > best_key:
                best_key, best = key, (bm, th)
    return best


def maxunpool_readout(hidden, indices, node_count):
    """hidden: (B, 1, H, W) float, indices: (B, 1, H, W) int (flat indices into the
    (H*node_count, W) output plane, as produced by max_pool2d(return_indices=True)).
    Returns (B, H*node_count, W).

    Documented precondition: every index lies inside its own (node_count, 1) pooling
    window; out-of-window / duplicate indices are silently dropped (output stays 0).
    """
    B, C, H, W = hidden.shape
    assert C == 1, "module squeezes dim 1, so channel dim must be 1"
    assert node_count > 0, "PyTorch module only unpools when node_count > 0"
    assert H * node_count * W <= jnp.iinfo(jnp.int32).max, "flat index must fit int32"
    H_out = H * node_count

    # Fold hl rows of H into the lane axis so the output block's last dim
    # L = hl*node_count*W is a multiple of 128 (dense unmasked stores, dense
    # writeback DMA).  These reshapes are free row-major regroupings.
    hl = _pick_lane_fold(H, node_count, W)
    Hc = H // hl
    in_lane = hl * W
    L = hl * node_count * W

    h2 = hidden.reshape(B, Hc, in_lane)
    idx2 = indices.reshape(B, Hc, in_lane).astype(jnp.int32)

    itemsize = jnp.dtype(hidden.dtype).itemsize
    sub = {4: 8, 2: 16, 1: 32}.get(itemsize, 8)
    bm, tHc = _pick_tiles(B, Hc, in_lane, L, itemsize, sub)
    grid = (B // bm, Hc // tHc)

    kernel = functools.partial(_unpool_kernel, node_count=node_count, W=W, hl=hl, L=L)

    out3 = pl.pallas_call(
        kernel,
        out_shape=jax.ShapeDtypeStruct((B, Hc, L), hidden.dtype),
        grid_spec=pltpu.PrefetchScalarGridSpec(
            num_scalar_prefetch=0,
            grid=grid,
            in_specs=[
                pl.BlockSpec((bm, tHc, in_lane), lambda b, h: (b, h, 0)),
                pl.BlockSpec((bm, tHc, in_lane), lambda b, h: (b, h, 0)),
            ],
            out_specs=pl.BlockSpec((bm, tHc, L), lambda b, h: (b, h, 0)),
        ),
        compiler_params=pltpu.CompilerParams(
            dimension_semantics=("parallel", "parallel"),
            vmem_limit_bytes=_VMEM_LIMIT),
    )(h2, idx2)

    # (B, Hc, hl*node_count*W) -> (B, H*node_count, W) is a pure row-major reshape
    # and realizes the .squeeze(1) of the NCHW max_unpool2d result.
    return out3.reshape(B, H_out, W)


def _reference(hidden, indices, node_count):
    """Pure-JAX reference of F.max_unpool2d(...).squeeze(1)."""
    B, C, H, W = hidden.shape
    H_out = H * node_count
    N_out = H_out * W
    h_flat = hidden.reshape(B, -1)
    idx_flat = indices.reshape(B, -1)

    def one(hv, iv):
        return jnp.zeros((N_out,), hv.dtype).at[iv].set(hv)

    out = jax.vmap(one)(h_flat, idx_flat)
    return out.reshape(B, H_out, W)


if __name__ == "__main__":
    key = jax.random.PRNGKey(0)
    k_h, k_r = jax.random.split(key)

    # small shapes consistent with the forward pass
    B, C, H, W = 2, 1, 8, 16          # hidden is the max-pooled tensor (NCHW)
    node_count = 4                    # batch_tree.get_child_count()
    H_out = H * node_count

    hidden = jax.random.normal(k_h, (B, C, H, W), dtype=jnp.float32)

    # deterministic pool indices: for each pooled cell (h, w) pick a row inside
    # its (node_count, 1) window; flat index into the (H_out, W) output plane,
    # exactly what torch.max_pool2d(return_indices=True) would have produced.
    r = jax.random.randint(k_r, (B, C, H, W), 0, node_count)
    row = jnp.arange(H).reshape(1, 1, H, 1) * node_count + r      # (B,1,H,W)
    col = jnp.arange(W).reshape(1, 1, 1, W)
    indices = (row * W + col).astype(jnp.int32)                   # (B,1,H,W)

    out = maxunpool_readout(hidden, indices, node_count)
    jax.block_until_ready(out)

    expected = _reference(hidden, indices, node_count)
    assert out.shape == (B, H_out, W), out.shape
    assert jnp.allclose(out, expected, atol=1e-6), "mismatch vs reference"
    print("KERNEL_OK")
</pallas_src>

<mosaic_0001>
module attributes {stable_mosaic.version = 11 : i64} {
  func.func @_unpool_kernel(%arg0: i32, %arg1: i32, %arg2: memref<1x4x32xf32, #tpu.memory_space<vmem>>, %arg3: memref<1x4x32xi32, #tpu.memory_space<vmem>>, %arg4: memref<1x4x128xf32, #tpu.memory_space<vmem>>) attributes {dimension_semantics = [#tpu.dimension_semantics<parallel>, #tpu.dimension_semantics<parallel>], iteration_bounds = array<i64: 2, 1>, scalar_prefetch = 0 : i64, scratch_operands = 0 : i64, tpu.core_type = #tpu.core_type<tc>, window_params = [{transform_indices = @transform_0, window_bounds = array<i64: 1, 4, 32>}, {transform_indices = @transform_1, window_bounds = array<i64: 1, 4, 32>}, {transform_indices = @transform_2, window_bounds = array<i64: 1, 4, 128>}]} {
    %c0 = arith.constant 0 : index
    %c0_0 = arith.constant 0 : index
    %c0_1 = arith.constant 0 : index
    %0 = vector.load %arg2[%c0, %c0_0, %c0_1] : memref<1x4x32xf32, #tpu.memory_space<vmem>>, vector<1x4x32xf32>
    %c0_2 = arith.constant 0 : index
    %c0_3 = arith.constant 0 : index
    %c0_4 = arith.constant 0 : index
    %1 = vector.load %arg3[%c0_2, %c0_3, %c0_4] : memref<1x4x32xi32, #tpu.memory_space<vmem>>, vector<1x4x32xi32>
    %c4_i32 = arith.constant 4 : i32
    %2 = arith.muli %arg1, %c4_i32 : i32
    %3 = tpu.iota {dimensions = array<i32: 1>} : vector<1x4x16xi32>
    %4 = vector.broadcast %2 : i32 to vector<1x4x16xi32>
    %5 = arith.addi %3, %4 : vector<1x4x16xi32>
    %6 = tpu.iota {dimensions = array<i32: 2>} : vector<1x4x16xi32>
    %c128_i32 = arith.constant 128 : i32
    %7 = vector.broadcast %c128_i32 : i32 to vector<1x4x16xi32>
    %8 = arith.muli %5, %7 : vector<1x4x16xi32>
    %9 = arith.addi %8, %6 : vector<1x4x16xi32>
    %10 = vector.extract_strided_slice %0 {offsets = [0, 0, 0], sizes = [1, 4, 16], strides = [1, 1, 1]} : vector<1x4x32xf32> to vector<1x4x16xf32>
    %11 = vector.extract_strided_slice %1 {offsets = [0, 0, 0], sizes = [1, 4, 16], strides = [1, 1, 1]} : vector<1x4x32xi32> to vector<1x4x16xi32>
    %c0_i32 = arith.constant 0 : i32
    %12 = vector.broadcast %c0_i32 : i32 to vector<1x4x16xi32>
    %13 = arith.addi %9, %12 : vector<1x4x16xi32>
    %14 = arith.cmpi eq, %11, %13 : vector<1x4x16xi32>
    %cst = arith.constant 0.000000e+00 : f32
    %15 = vector.broadcast %cst : f32 to vector<1x4x16xf32>
    %16 = arith.select %14, %10, %15 : vector<1x4x16xi1>, vector<1x4x16xf32>
    %c16_i32 = arith.constant 16 : i32
    %17 = vector.broadcast %c16_i32 : i32 to vector<1x4x16xi32>
    %18 = arith.addi %9, %17 : vector<1x4x16xi32>
    %19 = arith.cmpi eq, %11, %18 : vector<1x4x16xi32>
    %cst_5 = arith.constant 0.000000e+00 : f32
    %20 = vector.broadcast %cst_5 : f32 to vector<1x4x16xf32>
    %21 = arith.select %19, %10, %20 : vector<1x4x16xi1>, vector<1x4x16xf32>
    %c32_i32 = arith.constant 32 : i32
    %22 = vector.broadcast %c32_i32 : i32 to vector<1x4x16xi32>
    %23 = arith.addi %9, %22 : vector<1x4x16xi32>
    %24 = arith.cmpi eq, %11, %23 : vector<1x4x16xi32>
    %cst_6 = arith.constant 0.000000e+00 : f32
    %25 = vector.broadcast %cst_6 : f32 to vector<1x4x16xf32>
    %26 = arith.select %24, %10, %25 : vector<1x4x16xi1>, vector<1x4x16xf32>
    %c48_i32 = arith.constant 48 : i32
    %27 = vector.broadcast %c48_i32 : i32 to vector<1x4x16xi32>
    %28 = arith.addi %9, %27 : vector<1x4x16xi32>
    %29 = arith.cmpi eq, %11, %28 : vector<1x4x16xi32>
    %cst_7 = arith.constant 0.000000e+00 : f32
    %30 = vector.broadcast %cst_7 : f32 to vector<1x4x16xf32>
    %31 = arith.select %29, %10, %30 : vector<1x4x16xi1>, vector<1x4x16xf32>
    %32 = vector.extract_strided_slice %0 {offsets = [0, 0, 16], sizes = [1, 4, 16], strides = [1, 1, 1]} : vector<1x4x32xf32> to vector<1x4x16xf32>
    %33 = vector.extract_strided_slice %1 {offsets = [0, 0, 16], sizes = [1, 4, 16], strides = [1, 1, 1]} : vector<1x4x32xi32> to vector<1x4x16xi32>
    %c64_i32 = arith.constant 64 : i32
    %34 = vector.broadcast %c64_i32 : i32 to vector<1x4x16xi32>
    %35 = arith.addi %9, %34 : vector<1x4x16xi32>
    %36 = arith.cmpi eq, %33, %35 : vector<1x4x16xi32>
    %cst_8 = arith.constant 0.000000e+00 : f32
    %37 = vector.broadcast %cst_8 : f32 to vector<1x4x16xf32>
    %38 = arith.select %36, %32, %37 : vector<1x4x16xi1>, vector<1x4x16xf32>
    %c80_i32 = arith.constant 80 : i32
    %39 = vector.broadcast %c80_i32 : i32 to vector<1x4x16xi32>
    %40 = arith.addi %9, %39 : vector<1x4x16xi32>
    %41 = arith.cmpi eq, %33, %40 : vector<1x4x16xi32>
    %cst_9 = arith.constant 0.000000e+00 : f32
    %42 = vector.broadcast %cst_9 : f32 to vector<1x4x16xf32>
    %43 = arith.select %41, %32, %42 : vector<1x4x16xi1>, vector<1x4x16xf32>
    %c96_i32 = arith.constant 96 : i32
    %44 = vector.broadcast %c96_i32 : i32 to vector<1x4x16xi32>
    %45 = arith.addi %9, %44 : vector<1x4x16xi32>
    %46 = arith.cmpi eq, %33, %45 : vector<1x4x16xi32>
    %cst_10 = arith.constant 0.000000e+00 : f32
    %47 = vector.broadcast %cst_10 : f32 to vector<1x4x16xf32>
    %48 = arith.select %46, %32, %47 : vector<1x4x16xi1>, vector<1x4x16xf32>
    %c112_i32 = arith.constant 112 : i32
    %49 = vector.broadcast %c112_i32 : i32 to vector<1x4x16xi32>
    %50 = arith.addi %9, %49 : vector<1x4x16xi32>
    %51 = arith.cmpi eq, %33, %50 : vector<1x4x16xi32>
    %cst_11 = arith.constant 0.000000e+00 : f32
    %52 = vector.broadcast %cst_11 : f32 to vector<1x4x16xf32>
    %53 = arith.select %51, %32, %52 : vector<1x4x16xi1>, vector<1x4x16xf32>
    %54 = tpu.concatenate %16, %21, %26, %31, %38, %43, %48, %53 in 2 : vector<1x4x16xf32>, vector<1x4x16xf32>, vector<1x4x16xf32>, vector<1x4x16xf32>, vector<1x4x16xf32>, vector<1x4x16xf32>, vector<1x4x16xf32>, vector<1x4x16xf32> -> vector<1x4x128xf32>
    %c0_12 = arith.constant 0 : index
    %c0_13 = arith.constant 0 : index
    %c0_14 = arith.constant 0 : index
    %55 = vector.load %arg4[%c0_12, %c0_13, %c0_14] : memref<1x4x128xf32, #tpu.memory_space<vmem>>, vector<1x4x128xf32>
    tpu.vector_store %arg4[%c0_12, %c0_13, %c0_14], %54 {strides = array<i32>} : memref<1x4x128xf32, #tpu.memory_space<vmem>>, vector<1x4x128xf32>,
    return
  }
  func.func @transform_0(%arg0: i32, %arg1: i32) -> (i32, i32, i32) {
    %c0_i32 = arith.constant 0 : i32
    %c0_i32_0 = arith.constant 0 : i32
    return %arg0, %arg1, %c0_i32 : i32, i32, i32
  }
  func.func @transform_1(%arg0: i32, %arg1: i32) -> (i32, i32, i32) {
    %c0_i32 = arith.constant 0 : i32
    %c0_i32_0 = arith.constant 0 : i32
    return %arg0, %arg1, %c0_i32 : i32, i32, i32
  }
  func.func @transform_2(%arg0: i32, %arg1: i32) -> (i32, i32, i32) {
    %c0_i32 = arith.constant 0 : i32
    %c0_i32_0 = arith.constant 0 : i32
    return %arg0, %arg1, %c0_i32 : i32, i32, i32
  }
}

</mosaic_0001>

<llo_original>
// kernel: tpu_custom_call.1
$region0: #{tpu_custom_call.1}
  #allocation0 [shape = 'u32[]', space=smem, size = 0x4, offset = 0x4, fixed_abs, tag = 'smem constant byte address 0x4 - core index']
  #allocation1 [shape = 'u32[72,128]{1,0:T(1,128)}', space=vmem, size = 0x9000, scoped, tag = 'internal scratch']
  %s0 = inlined_call_operand.hbm [shape: f32[2,4,32], index: 0, kind: input, shape index: {}]
  %s1 = inlined_call_operand.hbm [shape: s32[2,4,32], index: 1, kind: input, shape index: {}]
  %s2 = inlined_call_operand.hbm [shape: f32[2,4,128], index: 2, kind: output, shape index: {}]
  %s3 = sld [smem:[#allocation0]]
  $region49: #{tpu_custom_call.1} parent=0
    _
  %s5 = ssub.s32 1, %s3
  %s6 = scalar_select 0, %s5, %s3
  $region1: #{tpu_custom_call.1} parent=0
    #allocation2 [shape = 'u8[4096]{0}', space=vmem, size = 0x1000, scoped, tag = 'input window, operand 0']
    #allocation3 [shape = 's32[2]{0}', space=sflag, size = 0x8, scoped, tag = 'scoped memory for tpu_custom_call.1']
    #allocation4 [shape = 's32[2]{0}', space=sflag, size = 0x8, scoped, tag = 'scoped memory for tpu_custom_call.1']
    #allocation5 [shape = 'u8[4096]{0}', space=vmem, size = 0x1000, scoped, tag = 'input window, operand 1']
    #allocation6 [shape = 's32[2]{0}', space=sflag, size = 0x8, scoped, tag = 'scoped memory for tpu_custom_call.1']
    #allocation7 [shape = 'u8[4096]{0}', space=vmem, size = 0x1000, scoped, tag = 'output window, operand 0']
    %7 = vsyncpa [#allocation3], 0
    %s8 = scalar_lea.sflag [#allocation3], 1
    %9 = vsyncpa %s8, 0
    %10 = vsyncpa [#allocation6], 0
    %s11 = scalar_lea.sflag [#allocation6], 1
    %12 = vsyncpa %s11, 0
    %13 = vsyncpa [#allocation4], 0
    %s14 = scalar_lea.sflag [#allocation4], 1
    %15 = vsyncpa %s14, 0
    loop: start=0, step=1, limit=4
    $region2: #{tpu_custom_call.1} parent=1 // loop_pre_header
      _
    $region3: #{tpu_custom_call.1} parent=1 // loop_header
      %s17 = sphi 0, %s21
      %p18 = scmp.ge.s32.totalorder %s17, 4
      %s24 = sphi 0, %s36
      %s25 = sphi 0, %s32
      %s26 = sphi 0, %s24
      %s27 = sphi 0, %s25
      %s28 = sphi 0, %s26
      %s29 = sphi 0, %s27
      %s41 = sphi 0, %s43
      %s44 = sphi 0, %s41
      %s45 = sphi 0, %s44
      %s61 = sphi 0, %s45
      %s69 = sphi 0, %s71
      %s72 = sphi 0, %s69
      %s73 = sphi 0, %s72
      %s89 = sphi 0, %s73
      %s97 = sphi 0, %s99
      %s100 = sphi 0, %s97
      %s101 = sphi 0, %s100
      %s117 = sphi 0, %s101
    $region4: #{tpu_custom_call.1} parent=1 // loop_header_branch
      %20 = sbr.rel (%p18) target = $region8
    $region5: #{tpu_custom_call.1} parent=1 // loop_body
      %s22 = ssub.s32 %s17, 1
      %s23 = ssub.s32 %s17, 2
      %s30 = sadd.s32 1, %s25
      %p31 = scmp.ge.s32.totalorder %s30, 1
      %s32 = scalar_select %p31, 0, %s30
      %s33 = sadd.s32 1, %s24
      %s34 = scalar_select %p31, %s33, %s24
      %p35 = scmp.ge.s32.totalorder %s34, 2
      %s36 = scalar_select %p35, 0, %s34
      %s37 = ssub.s32 %s24, %s36
      %s38 = ssub.s32 %s25, %s32
      %s39 = sor.u32 %s37, %s38
      %p40 = scmp.eq.s32.totalorder %s39, 0
      %s42 = sadd.s32 %s41, 1
      %s43 = scalar_select %p40, %s41, %s42
      %p46 = pneg %p40
      %p47 = scmp.eq.s32.totalorder %s17, 1
      %p48 = por %p46, %p47
      %p49 = scmp.ne.s32.totalorder %s41, %s44
      %p50 = scmp.eq.s32.totalorder %s17, 0
      %p51 = por %p49, %p50
      %p52 = scmp.ne.s32.totalorder %s41, %s44
      %p53 = scmp.eq.s32.totalorder %s22, 1
      %p54 = por %p52, %p53
      %p55 = scmp.ne.s32.totalorder %s44, %s45
      %p56 = scmp.eq.s32.totalorder %s22, 0
      %p57 = por %p55, %p56
      %p58 = scmp.ne.s32.totalorder %s44, %s45
      %p59 = scmp.eq.s32.totalorder %s23, 1
      %p60 = por %p58, %p59
      %p62 = scmp.ne.s32.totalorder %s45, %s61
      %p63 = scmp.eq.s32.totalorder %s23, 0
      %p64 = por %p62, %p63
      %s65 = ssub.s32 %s24, %s36
      %s66 = ssub.s32 %s25, %s32
      %s67 = sor.u32 %s65, %s66
      %p68 = scmp.eq.s32.totalorder %s67, 0
      %s70 = sadd.s32 %s69, 1
      %s71 = scalar_select %p68, %s69, %s70
      %p74 = pneg %p68
      %p75 = scmp.eq.s32.totalorder %s17, 1
      %p76 = por %p74, %p75
      %p77 = scmp.ne.s32.totalorder %s69, %s72
      %p78 = scmp.eq.s32.totalorder %s17, 0
      %p79 = por %p77, %p78
      %p80 = scmp.ne.s32.totalorder %s69, %s72
      %p81 = scmp.eq.s32.totalorder %s22, 1
      %p82 = por %p80, %p81
      %p83 = scmp.ne.s32.totalorder %s72, %s73
      %p84 = scmp.eq.s32.totalorder %s22, 0
      %p85 = por %p83, %p84
      %p86 = scmp.ne.s32.totalorder %s72, %s73
      %p87 = scmp.eq.s32.totalorder %s23, 1
      %p88 = por %p86, %p87
      %p90 = scmp.ne.s32.totalorder %s73, %s89
      %p91 = scmp.eq.s32.totalorder %s23, 0
      %p92 = por %p90, %p91
      %s93 = ssub.s32 %s24, %s36
      %s94 = ssub.s32 %s25, %s32
      %s95 = sor.u32 %s93, %s94
      %p96 = scmp.eq.s32.totalorder %s95, 0
      %s98 = sadd.s32 %s97, 1
      %s99 = scalar_select %p96, %s97, %s98
      %p102 = pneg %p96
      %p103 = scmp.eq.s32.totalorder %s17, 1
      %p104 = por %p102, %p103
      %p105 = scmp.ne.s32.totalorder %s97, %s100
      %p106 = scmp.eq.s32.totalorder %s17, 0
      %p107 = por %p105, %p106
      %p108 = scmp.ne.s32.totalorder %s97, %s100
      %p109 = scmp.eq.s32.totalorder %s22, 1
      %p110 = por %p108, %p109
      %p111 = scmp.ne.s32.totalorder %s100, %s101
      %p112 = scmp.eq.s32.totalorder %s22, 0
      %p113 = por %p111, %p112
      %p114 = scmp.ne.s32.totalorder %s100, %s101
      %p115 = scmp.eq.s32.totalorder %s23, 1
      %p116 = por %p114, %p115
      %p118 = scmp.ne.s32.totalorder %s101, %s117
      %p119 = scmp.eq.s32.totalorder %s23, 0
      %p120 = por %p118, %p119
      %p121 = scmp.le.s32.totalorder 1, %s17
      %p122 = scmp.lt.s32.totalorder %s17, 3
      %p123 = pnand %p121, %p122
      %p124 = pneg %p123
      // Predicated region
      $region9: #{tpu_custom_call.1} parent=5 // pred_check
        _
      $region10: #{tpu_custom_call.1} parent=5 // pred_check_branch
        %126 = sbr.rel (%p123) target = $region12
      $region11: #{tpu_custom_call.1} parent=5 // pred_region
        %s127 = ssub.s32 %s17, 1
      $region12: #{tpu_custom_call.1} parent=5 // pred_fallthru
        _
      %p128 = scmp.lt.s32.totalorder %s17, 2
      // Predicated region
      $region13: #{tpu_custom_call.1} parent=5 // pred_check
        %p129 = pneg %p128
      $region14: #{tpu_custom_call.1} parent=5 // pred_check_branch
        %131 = sbr.rel (%p129) target = $region16
      $region15: #{tpu_custom_call.1} parent=5 // pred_region
        // Predicated region
        $region17: #{tpu_custom_call.1} parent=15 // pred_check
          %p132 = pneg %p51
        $region18: #{tpu_custom_call.1} parent=15 // pred_check_branch
          %134 = sbr.rel (%p132) target = $region20
        $region19: #{tpu_custom_call.1} parent=15 // pred_region
          %s135 = sand.u32 %s41, 1
          %s136 = scalar_lea.sflag [#allocation3], %s135
          %s137 = sand.u32 %s41, 1
          %s138 = smul.addr %s137, 4
          %s139 = scalar_lea.vmem [#allocation2], %s138
          %141 = vsyncadd %s136, 0
          %s142 = sadd.s32 %s25, %s24
          %s143 = smul.addr %s142, 4
          %s144 = scalar_lea.hbm %s0, %s143
          %s146 = sshll.u32 %s144, 4
          %s147 = int_to_ptr.hbm [resolvable:$true] %s146
          %s148 = sshll.u32 %s139, 4
          %s149 = int_to_ptr.vmem [resolvable:$true] %s148
          %151 = dma.hbm_to_vmem [thread:$0]  %s147, 64, %s149, %s136
        $region20: #{tpu_custom_call.1} parent=15 // pred_fallthru
          _
        // Predicated region
        $region21: #{tpu_custom_call.1} parent=15 // pred_check
          %p152 = pneg %p79
        $region22: #{tpu_custom_call.1} parent=15 // pred_check_branch
          %154 = sbr.rel (%p152) target = $region24
        $region23: #{tpu_custom_call.1} parent=15 // pred_region
          %s155 = sand.u32 %s69, 1
          %s156 = scalar_lea.sflag [#allocation6], %s155
          %s157 = sand.u32 %s69, 1
          %s158 = smul.addr %s157, 4
          %s159 = scalar_lea.vmem [#allocation5], %s158
          %161 = vsyncadd %s156, 0
          %s162 = sadd.s32 %s25, %s24
          %s163 = smul.addr %s162, 4
          %s164 = scalar_lea.hbm %s1, %s163
          %s166 = sshll.u32 %s164, 4
          %s167 = int_to_ptr.hbm [resolvable:$true] %s166
          %s168 = sshll.u32 %s159, 4
          %s169 = int_to_ptr.vmem [resolvable:$true] %s168
          %171 = dma.hbm_to_vmem [thread:$0]  %s167, 64, %s169, %s156
        $region24: #{tpu_custom_call.1} parent=15 // pred_fallthru
          _
      $region16: #{tpu_custom_call.1} parent=5 // pred_fallthru
        _
      %p172 = scmp.le.s32.totalorder 1, %s17
      %p173 = scmp.lt.s32.totalorder %s17, 3
      %p174 = pnand %p172, %p173
      %p175 = pneg %p174
      // Predicated region
      $region25: #{tpu_custom_call.1} parent=5 // pred_check
        _
      $region26: #{tpu_custom_call.1} parent=5 // pred_check_branch
        %177 = sbr.rel (%p174) target = $region28
      $region27: #{tpu_custom_call.1} parent=5 // pred_region
        %s178 = ssub.s32 %s17, 1
        %s179 = sand.u32 %s44, 1
        %s180 = scalar_lea.sflag [#allocation3], %s179
        %s181 = sand.u32 %s44, 1
        %s182 = smul.addr %s181, 4
        %s183 = scalar_lea.vmem [#allocation2], %s182
        // Predicated region
        $region29: #{tpu_custom_call.1} parent=27 // pred_check
          %p184 = pneg %p57
        $region30: #{tpu_custom_call.1} parent=27 // pred_check_branch
          %186 = sbr.rel (%p184) target = $region32
        $region31: #{tpu_custom_call.1} parent=27 // pred_region
          %188 = dma.done %s180, 64
        $region32: #{tpu_custom_call.1} parent=27 // pred_fallthru
          _
        %s189 = sand.u32 %s72, 1
        %s190 = scalar_lea.sflag [#allocation6], %s189
        %s191 = sand.u32 %s72, 1
        %s192 = smul.addr %s191, 4
        %s193 = scalar_lea.vmem [#allocation5], %s192
        // Predicated region
        $region33: #{tpu_custom_call.1} parent=27 // pred_check
          %p194 = pneg %p85
        $region34: #{tpu_custom_call.1} parent=27 // pred_check_branch
          %196 = sbr.rel (%p194) target = $region36
        $region35: #{tpu_custom_call.1} parent=27 // pred_region
          %198 = dma.done %s190, 64
        $region36: #{tpu_custom_call.1} parent=27 // pred_fallthru
          _
        %s199 = sand.u32 %s44, 1
        %s200 = scalar_lea.sflag [#allocation3], %s199
        %s201 = sand.u32 %s44, 1
        %s202 = smul.addr %s201, 4
        %s203 = scalar_lea.vmem [#allocation2], %s202
        %p204 = pneg %p57
        %p205 = pneg %p54
        %s206 = sand.u32 %s72, 1
        %s207 = scalar_lea.sflag [#allocation6], %s206
        %s208 = sand.u32 %s72, 1
        %s209 = smul.addr %s208, 4
        %s210 = scalar_lea.vmem [#allocation5], %s209
        %p211 = pneg %p85
        %p212 = pneg %p82
        %p213 = pneg %p113
        %p214 = pneg %p110
        %s215 = sand.u32 %s100, 1
        %s216 = scalar_lea.sflag [#allocation4], %s215
        %s217 = sand.u32 %s100, 1
        %s218 = smul.addr %s217, 4
        %s219 = scalar_lea.vmem [#allocation7], %s218
        %v220 = vld [vmem:[%s183] sm:$0xf]
        %v221 = vld [vmem:[%s193] sm:$0xf]
        %s222 = smul.u32 %s27, 4
        %v223 = vlaneseq
        %v224 = vshrl.u32 %v223, 7
        %v225 = vstv %s222
        %v226 = vadd.s32 %v224, %v225
        %v227 = vlaneseq
        %v228 = vand.u32 %v227, 127
        %v229 = vmul.u32 %v226, 128
        %v230 = vadd.s32 %v229, %v228
        %vm231 = vcmp.eq.s32.totalorder %v221, %v230
        %v232 = vsel %vm231, %v220, 0.0
        %v233 = vadd.s32 %v230, 16
        %vm234 = vcmp.eq.s32.totalorder %v221, %v233
        %v235 = vsel %vm234, %v220, 0.0
        %v236 = vadd.s32 %v230, 32
        %vm237 = vcmp.eq.s32.totalorder %v221, %v236
        %v238 = vsel %vm237, %v220, 0.0
        %v239 = vadd.s32 %v230, 48
        %vm240 = vcmp.eq.s32.totalorder %v221, %v239
        %v241 = vsel %vm240, %v220, 0.0
        %v242 = vadd.s32 %v230, 64
        %243 = vrot.lane.b32.xlu0 %v242, 16
        %v244 = vpop.permute.xlu0 %243
        %vm245 = vcmp.eq.s32.totalorder %v221, %v244
        %v246 = vsel %vm245, %v220, 0.0
        %v247 = vadd.s32 %v230, 80
        %248 = vrot.lane.b32.xlu0 %v247, 16
        %v249 = vpop.permute.xlu0 %248
        %vm250 = vcmp.eq.s32.totalorder %v221, %v249
        %v251 = vsel %vm250, %v220, 0.0
        %v252 = vadd.s32 %v230, 96
        %253 = vrot.lane.b32.xlu0 %v252, 16
        %v254 = vpop.permute.xlu0 %253
        %vm255 = vcmp.eq.s32.totalorder %v221, %v254
        %v256 = vsel %vm255, %v220, 0.0
        %v257 = vadd.s32 %v230, 112
        %258 = vrot.lane.b32.xlu0 %v257, 16
        %v259 = vpop.permute.xlu0 %258
        %vm260 = vcmp.eq.s32.totalorder %v221, %v259
        %v261 = vsel %vm260, %v220, 0.0
        %263 = vrot.lane.b32.xlu0 %v235, 16
        %v264 = vpop.permute.xlu0 %263
        %267 = vrot.lane.b32.xlu0 %v238, 32
        %v268 = vpop.permute.xlu0 %267
        %271 = vrot.lane.b32.xlu0 %v241, 48
        %v272 = vpop.permute.xlu0 %271
        %275 = vrot.lane.b32.xlu0 %v246, 48
        %v276 = vpop.permute.xlu0 %275
        %279 = vrot.lane.b32.xlu0 %v251, 64
        %v280 = vpop.permute.xlu0 %279
        %283 = vrot.lane.b32.xlu0 %v256, 80
        %v284 = vpop.permute.xlu0 %283
        %287 = vrot.lane.b32.xlu0 %v261, 96
        %v288 = vpop.permute.xlu0 %287
        %vm290 = vcmask 130048
        %v291 = vsel %vm290, %v232, %v264
        %vm292 = vcmask 261120
        %v293 = vsel %vm292, %v291, %v268
        %vm294 = vcmask 392192
        %v295 = vsel %vm294, %v293, %v272
        %vm296 = vcmask 523264
        %v297 = vsel %vm296, %v295, %v276
        %vm298 = vcmask 654336
        %v299 = vsel %vm298, %v297, %v280
        %vm300 = vcmask 785408
        %v301 = vsel %vm300, %v299, %v284
        %vm302 = vcmask 916480
        %v303 = vsel %vm302, %v301, %v288
        %304 = vst [vmem:[%s219] sm:$0xf] %v303
        %s305 = sand.u32 %s100, 1
        %s306 = scalar_lea.sflag [#allocation4], %s305
        %s307 = sand.u32 %s100, 1
        %s308 = smul.addr %s307, 4
        %s309 = scalar_lea.vmem [#allocation7], %s308
        // Predicated region
        $region37: #{tpu_custom_call.1} parent=27 // pred_check
          %p310 = pneg %p110
        $region38: #{tpu_custom_call.1} parent=27 // pred_check_branch
          %312 = sbr.rel (%p310) target = $region40
        $region39: #{tpu_custom_call.1} parent=27 // pred_region
          %314 = vsyncadd %s306, 0
          %s315 = sadd.s32 %s27, %s26
          %s316 = smul.addr %s315, 4
          %s317 = scalar_lea.hbm %s2, %s316
          %s319 = sshll.u32 %s309, 4
          %s320 = int_to_ptr.vmem [resolvable:$true] %s319
          %s321 = sshll.u32 %s317, 4
          %s322 = int_to_ptr.hbm [resolvable:$true] %s321
          %324 = dma.vmem_to_hbm [thread:$0]  %s320, 64, %s322, %s306
        $region40: #{tpu_custom_call.1} parent=27 // pred_fallthru
          _
      $region28: #{tpu_custom_call.1} parent=5 // pred_fallthru
        _
      %p325 = scmp.le.s32.totalorder 2, %s17
      // Predicated region
      $region41: #{tpu_custom_call.1} parent=5 // pred_check
        %p326 = pneg %p325
      $region42: #{tpu_custom_call.1} parent=5 // pred_check_branch
        %328 = sbr.rel (%p326) target = $region44
      $region43: #{tpu_custom_call.1} parent=5 // pred_region
        %s329 = ssub.s32 %s17, 2
        // Predicated region
        $region45: #{tpu_custom_call.1} parent=43 // pred_check
          %p330 = pneg %p116
        $region46: #{tpu_custom_call.1} parent=43 // pred_check_branch
          %332 = sbr.rel (%p330) target = $region48
        $region47: #{tpu_custom_call.1} parent=43 // pred_region
          %s333 = sand.u32 %s101, 1
          %s334 = scalar_lea.sflag [#allocation4], %s333
          %s335 = sand.u32 %s101, 1
          %s336 = smul.addr %s335, 4
          %s337 = scalar_lea.vmem [#allocation7], %s336
          %339 = dma.done %s334, 64
        $region48: #{tpu_custom_call.1} parent=43 // pred_fallthru
          _
      $region44: #{tpu_custom_call.1} parent=5 // pred_fallthru
        _
    $region6: #{tpu_custom_call.1} parent=1 // loop_footer
      %s21 = sadd.s32 1, %s17
    $region7: #{tpu_custom_call.1} parent=1 // loop_footer_branch
      %16 = sbr.rel target = $region3
    $region8: #{tpu_custom_call.1} parent=1 // loop_exit
      _
    %340 = vsyncpa [#allocation3], 1
    %s341 = scalar_lea.sflag [#allocation3], 1
    %342 = vsyncpa %s341, 1
    %343 = vsyncpa [#allocation6], 1
    %s344 = scalar_lea.sflag [#allocation6], 1
    %345 = vsyncpa %s344, 1
    %346 = vsyncpa [#allocation4], 1
    %s347 = scalar_lea.sflag [#allocation4], 1
    %348 = vsyncpa %s347, 1

</llo_original>
